<compile_context>
chip_gen: v7x
topology: tpu7x:2x2x1
jax: 0.10.0
libtpu: 0.0.40
codegen_flags: <defaults>
</compile_context>

<pallas_src>
import functools

import jax
import jax.numpy as jnp
from jax import lax
from jax.experimental import pallas as pl
from jax.experimental.pallas import tpu as pltpu


def _round_up(x, m):
    return ((x + m - 1) // m) * m


def _masked_tv_kernel(pred_ref, mask_ref, out_ref, carry_p_ref, carry_m_ref,
                      *, h_valid):
    """One (sample, H-tile) grid step.

    pred_ref:    (C, TH, W)  current rows of one sample (native dtype)
    mask_ref:    (TH, W)     mask rows (channel dim of mask is 1)
    out_ref:     (8, W)      per-sample accumulator; rows 0..3 hold lane-wise
                             partials [y_num, x_num, y_den, x_den]
    carry_p_ref: (C, 8, W)   previous tile's last 8 pred rows (row 7 used)
    carry_m_ref: (8, W)      previous tile's last 8 mask rows (row 7 used)
    """
    j = pl.program_id(1)
    tile_h, w = mask_ref.shape

    @pl.when(j == 0)
    def _init():
        out_ref[...] = jnp.zeros_like(out_ref)
        carry_p_ref[...] = jnp.zeros_like(carry_p_ref)   # avoid NaN * 0
        carry_m_ref[...] = jnp.zeros_like(carry_m_ref)

    p = pred_ref[...]                                   # (C, TH, W), native
    m = mask_ref[...].astype(jnp.float32)               # (TH, W)

    rows = lax.broadcasted_iota(jnp.int32, (tile_h, w), 0)
    cols = lax.broadcasted_iota(jnp.int32, (tile_h, w), 1)

    # ---- vertical term: pair (g-1, g) with weight mask[g-1], g = global row ----
    p_up = pltpu.roll(p, shift=1, axis=1)               # row r <- row r-1 (wraps)
    p_up = jnp.where(rows == 0, carry_p_ref[:, 7:8, :], p_up)
    m_up = pltpu.roll(m, shift=1, axis=0)
    m_up = jnp.where(rows == 0, carry_m_ref[7:8, :], m_up)
    # valid pairs: 1 <= g <= h_valid - 1   (g = j*tile_h + row)
    row_lo = 1 - j * tile_h
    row_hi = (h_valid - 1) - j * tile_h
    y_w = jnp.where((rows >= row_lo) & (rows <= row_hi), m_up, 0.0)
    # diff/abs in native dtype, single cast at the channel reduction
    y_abs = jnp.sum(jnp.abs(p - p_up).astype(jnp.float32), axis=0)   # (TH, W)

    # ---- horizontal term: pair (col, col+1) with weight mask[col] ----
    p_rt = pltpu.roll(p, shift=w - 1, axis=2)            # col c <- col c+1 (wraps)
    x_abs = jnp.sum(jnp.abs(p - p_rt).astype(jnp.float32), axis=0)   # (TH, W)
    x_w = jnp.where(cols < w - 1, m, 0.0)                # padded rows: m == 0

    # Lane-resident partial sums (rows only); cross-lane reduce in the wrapper.
    y_num = jnp.sum(y_abs * y_w, axis=0, keepdims=True)  # (1, W)
    x_num = jnp.sum(x_abs * x_w, axis=0, keepdims=True)
    y_den = jnp.sum(y_w, axis=0, keepdims=True)
    x_den = jnp.sum(x_w, axis=0, keepdims=True)

    rows8 = lax.broadcasted_iota(jnp.int32, (8, w), 0)
    upd = (jnp.where(rows8 == 0, y_num, 0.0)
           + jnp.where(rows8 == 1, x_num, 0.0)
           + jnp.where(rows8 == 2, y_den, 0.0)
           + jnp.where(rows8 == 3, x_den, 0.0))
    out_ref[...] += upd

    # Carry this tile's last (sublane-aligned) 8 rows to the next H tile.
    carry_p_ref[...] = p[:, tile_h - 8:tile_h, :]
    carry_m_ref[...] = m[tile_h - 8:tile_h, :]


def _default_vmem_budget_bytes():
    """~3/4 of per-core VMEM, capped at 96 MiB (v5e/v6e: 96 MiB, v7x: 48 MiB)."""
    try:
        cap = int(pltpu.get_tpu_info().vmem_capacity_bytes)
    except Exception:
        cap = 64 * 1024 * 1024   # conservative (v7x-class per-core VMEM)
    return int(min(96 * 1024 * 1024, max(16 * 1024 * 1024, (cap * 3) // 4)))


def masked_tv_loss(pred, mask, loss_weight=1.0, *, tile_h=None,
                   pred_tile_budget_bytes=None):
    """MaskedTVLoss forward. pred: (N, C, H, W); mask: (N, 1, H, W) -> scalar.

    `mask` may be float32/bfloat16/uint8/bool; it is upcast to f32 in VMEM, so
    pass it in its narrow storage dtype to save HBM bandwidth.
    """
    n, c, h, w = pred.shape
    assert mask.shape == (n, 1, h, w), (pred.shape, mask.shape)

    # TODO(synk): for W < 128 (or W % 128 != 0), pack 128 // W rows per lane
    # group (with pack-boundary masking) for lane-dense layout; skipped here.
    # TODO(synk): for N == 1 on multi-core parts, add a parallel H-chunk grid
    # axis (with per-chunk boundary handling) so both TensorCores stream.

    itemsize = jnp.dtype(pred.dtype).itemsize
    vmem_budget = _default_vmem_budget_bytes()
    if pred_tile_budget_bytes is None:
        # budget/8 leaves room for double-buffered inputs + in-kernel temps.
        pred_tile_budget_bytes = max(512 * 1024, vmem_budget // 8)

    # ---- choose an H tile (multiple of 8) ----
    if tile_h is None:
        rows_budget = max(8, pred_tile_budget_bytes // max(1, c * w * itemsize))
        n_tiles = max(1, -(-h // rows_budget))           # ceil
        tile_h = _round_up(-(-h // n_tiles), 8)
    tile_h = max(8, (int(tile_h) // 8) * 8)
    tile_h = min(tile_h, _round_up(h, 8))
    h_pad = _round_up(h, tile_h)
    if h_pad != h:
        pad = ((0, 0), (0, 0), (0, h_pad - h), (0, 0))
        pred = jnp.pad(pred, pad)    # zero rows; excluded by mask/validity
        mask = jnp.pad(mask, pad)
    n_h = h_pad // tile_h

    in_specs = [
        # current pred tile: kernel sees (C, TH, W)
        pl.BlockSpec((None, c, tile_h, w), lambda i, j: (i, 0, j, 0)),
        # mask tile: kernel sees (TH, W)
        pl.BlockSpec((None, None, tile_h, w), lambda i, j: (i, 0, j, 0)),
    ]
    out_specs = pl.BlockSpec((None, 8, w), lambda i, j: (i, 0, 0))

    cost = pl.CostEstimate(
        flops=int(8 * n * c * h_pad * w),
        transcendentals=0,
        bytes_accessed=int(pred.nbytes + mask.nbytes + n * 8 * w * 4),
    )

    kernel = functools.partial(_masked_tv_kernel, h_valid=h)
    partials = pl.pallas_call(
        kernel,
        grid=(n, n_h),
        in_specs=in_specs,
        out_specs=out_specs,
        out_shape=jax.ShapeDtypeStruct((n, 8, w), jnp.float32),
        scratch_shapes=[pltpu.VMEM((c, 8, w), pred.dtype),   # pred row carry
                        pltpu.VMEM((8, w), jnp.float32)],     # mask row carry
        compiler_params=pltpu.CompilerParams(
            dimension_semantics=("parallel", "arbitrary"),
            vmem_limit_bytes=int(vmem_budget),
        ),
        cost_estimate=cost,
    )(pred, mask)

    # rows 0..3 hold lane-wise [y_num, x_num, y_den, x_den]
    sums = jnp.sum(partials[:, :4, :], axis=(0, 2))
    eps = 1e-12
    y_loss = loss_weight * (sums[0] / (c * sums[2] + eps))
    x_loss = loss_weight * (sums[1] / (c * sums[3] + eps))
    return x_loss + y_loss


def _reference_masked_tv_loss(pred, mask, loss_weight=1.0):
    """Pure-JAX reference mirroring mmedit's MaskedTVLoss forward."""
    eps = 1e-12
    c = pred.shape[1]
    y_num = jnp.sum(jnp.abs(pred[:, :, :-1, :] - pred[:, :, 1:, :])
                    * mask[:, :, :-1, :])
    y = loss_weight * (y_num / (jnp.sum(mask[:, :, :-1, :]) * c + eps))
    x_num = jnp.sum(jnp.abs(pred[:, :, :, :-1] - pred[:, :, :, 1:])
                    * mask[:, :, :, :-1])
    x = loss_weight * (x_num / (jnp.sum(mask[:, :, :, :-1]) * c + eps))
    return x + y


if __name__ == "__main__":
    key = jax.random.PRNGKey(0)
    k1, k2, k3, k4 = jax.random.split(key, 4)

    # Small, lane-friendly image: batch=2, channels=4, H=16, W=128.
    N, C, H, W = 2, 4, 16, 128
    pred = jax.random.normal(k1, (N, C, H, W), dtype=jnp.float32)
    mask = (jax.random.uniform(k2, (N, 1, H, W)) > 0.3).astype(jnp.float32)

    # Multi-tile path (exercises the cross-tile carry).
    out1 = jax.block_until_ready(masked_tv_loss(pred, mask, loss_weight=1.0,
                                                tile_h=8))
    ref1 = _reference_masked_tv_loss(pred, mask, loss_weight=1.0)
    assert jnp.allclose(out1, ref1, rtol=5e-5, atol=1e-6), (float(out1), float(ref1))

    # Auto tile (single H tile) + non-unit loss weight.
    out2 = jax.block_until_ready(masked_tv_loss(pred, mask, loss_weight=0.5))
    ref2 = _reference_masked_tv_loss(pred, mask, loss_weight=0.5)
    assert jnp.allclose(out2, ref2, rtol=5e-5, atol=1e-6), (float(out2), float(ref2))

    # H not a multiple of the tile (exercises zero-padding) + odd channel count.
    pred3 = jax.random.normal(k3, (1, 3, 12, 128), dtype=jnp.float32)
    mask3 = (jax.random.uniform(k4, (1, 1, 12, 128)) > 0.5).astype(jnp.float32)
    out3 = jax.block_until_ready(masked_tv_loss(pred3, mask3, tile_h=8))
    ref3 = _reference_masked_tv_loss(pred3, mask3)
    assert jnp.allclose(out3, ref3, rtol=5e-5, atol=1e-6), (float(out3), float(ref3))

    print("KERNEL_OK")
</pallas_src>

<mosaic_0001>
module attributes {stable_mosaic.version = 11 : i64} {
  func.func @_masked_tv_kernel(%arg0: i32, %arg1: i32, %arg2: memref<1x4x8x128xf32, #tpu.memory_space<vmem>>, %arg3: memref<1x1x8x128xf32, #tpu.memory_space<vmem>>, %arg4: memref<1x8x128xf32, #tpu.memory_space<vmem>>, %arg5: memref<4x8x128xf32, #tpu.memory_space<vmem>>, %arg6: memref<8x128xf32, #tpu.memory_space<vmem>>) attributes {dimension_semantics = [#tpu.dimension_semantics<parallel>, #tpu.dimension_semantics<arbitrary>], iteration_bounds = array<i64: 2, 2>, scalar_prefetch = 0 : i64, scratch_operands = 2 : i64, tpu.core_type = #tpu.core_type<tc>, window_params = [{transform_indices = @transform_0, window_bounds = array<i64: 1, 4, 8, 128>}, {transform_indices = @transform_1, window_bounds = array<i64: 1, 1, 8, 128>}, {transform_indices = @transform_2, window_bounds = array<i64: 1, 8, 128>}]} {
    %c0_i32 = arith.constant 0 : i32
    %0 = arith.cmpi eq, %arg1, %c0_i32 : i32
    %1 = arith.extui %0 : i1 to i32
    %c0_i32_0 = arith.constant 0 : i32
    %2 = arith.cmpi ne, %1, %c0_i32_0 : i32
    scf.if %2 {
      %cst_42 = arith.constant 0.000000e+00 : f32
      %93 = vector.broadcast %cst_42 : f32 to vector<8x128xf32>
      %c0_43 = arith.constant 0 : index
      %c0_44 = arith.constant 0 : index
      %c0_45 = arith.constant 0 : index
      %94 = vector.load %arg4[%c0_43, %c0_44, %c0_45] : memref<1x8x128xf32, #tpu.memory_space<vmem>>, vector<1x8x128xf32>
      %95 = vector.shape_cast %94 : vector<1x8x128xf32> to vector<8x128xf32>
      %96 = vector.shape_cast %93 : vector<8x128xf32> to vector<1x8x128xf32>
      tpu.vector_store %arg4[%c0_43, %c0_44, %c0_45], %96 {strides = array<i32>} : memref<1x8x128xf32, #tpu.memory_space<vmem>>, vector<1x8x128xf32>,
      %cst_46 = arith.constant 0.000000e+00 : f32
      %97 = vector.broadcast %cst_46 : f32 to vector<4x8x128xf32>
      %c0_47 = arith.constant 0 : index
      %c0_48 = arith.constant 0 : index
      %c0_49 = arith.constant 0 : index
      %98 = vector.load %arg5[%c0_47, %c0_48, %c0_49] : memref<4x8x128xf32, #tpu.memory_space<vmem>>, vector<4x8x128xf32>
      tpu.vector_store %arg5[%c0_47, %c0_48, %c0_49], %97 {strides = array<i32>} : memref<4x8x128xf32, #tpu.memory_space<vmem>>, vector<4x8x128xf32>,
      %cst_50 = arith.constant 0.000000e+00 : f32
      %99 = vector.broadcast %cst_50 : f32 to vector<8x128xf32>
      %c0_51 = arith.constant 0 : index
      %c0_52 = arith.constant 0 : index
      %100 = vector.load %arg6[%c0_51, %c0_52] : memref<8x128xf32, #tpu.memory_space<vmem>>, vector<8x128xf32>
      tpu.vector_store %arg6[%c0_51, %c0_52], %99 {strides = array<i32>} : memref<8x128xf32, #tpu.memory_space<vmem>>, vector<8x128xf32>,
    } else {
    }
    %c0 = arith.constant 0 : index
    %c0_1 = arith.constant 0 : index
    %c0_2 = arith.constant 0 : index
    %c0_3 = arith.constant 0 : index
    %3 = vector.load %arg2[%c0, %c0_1, %c0_2, %c0_3] : memref<1x4x8x128xf32, #tpu.memory_space<vmem>>, vector<1x4x8x128xf32>
    %4 = vector.shape_cast %3 : vector<1x4x8x128xf32> to vector<4x8x128xf32>
    %c0_4 = arith.constant 0 : index
    %c0_5 = arith.constant 0 : index
    %c0_6 = arith.constant 0 : index
    %c0_7 = arith.constant 0 : index
    %5 = vector.load %arg3[%c0_4, %c0_5, %c0_6, %c0_7] : memref<1x1x8x128xf32, #tpu.memory_space<vmem>>, vector<1x1x8x128xf32>
    %6 = vector.shape_cast %5 : vector<1x1x8x128xf32> to vector<8x128xf32>
    %7 = tpu.iota {dimensions = array<i32: 0>} : vector<8x128xi32>
    %8 = tpu.iota {dimensions = array<i32: 1>} : vector<8x128xi32>
    %c1_i32 = arith.constant 1 : i32
    %9 = tpu.dynamic_rotate %4 by %c1_i32 dim 1 : vector<4x8x128xf32>, i32 -> vector<4x8x128xf32>
    %c0_i32_8 = arith.constant 0 : i32
    %10 = vector.broadcast %c0_i32_8 : i32 to vector<8x128xi32>
    %11 = arith.cmpi eq, %7, %10 : vector<8x128xi32>
    %c0_9 = arith.constant 0 : index
    %c7 = arith.constant 7 : index
    %c0_10 = arith.constant 0 : index
    %12 = vector.load %arg5[%c0_9, %c7, %c0_10] : memref<4x8x128xf32, #tpu.memory_space<vmem>>, vector<4x1x128xf32>
    %13 = vector.shape_cast %11 : vector<8x128xi1> to vector<1x8x128xi1>
    %14 = vector.broadcast %13 : vector<1x8x128xi1> to vector<4x8x128xi1>
    %15 = vector.shape_cast %12 : vector<4x1x128xf32> to vector<4x1x128xf32>
    %16 = vector.broadcast %15 : vector<4x1x128xf32> to vector<4x8x128xf32>
    %17 = arith.select %14, %16, %9 : vector<4x8x128xi1>, vector<4x8x128xf32>
    %c1_i32_11 = arith.constant 1 : i32
    %18 = tpu.dynamic_rotate %6 by %c1_i32_11 dim 0 : vector<8x128xf32>, i32 -> vector<8x128xf32>
    %c0_i32_12 = arith.constant 0 : i32
    %19 = vector.broadcast %c0_i32_12 : i32 to vector<8x128xi32>
    %20 = arith.cmpi eq, %7, %19 : vector<8x128xi32>
    %c7_13 = arith.constant 7 : index
    %c0_14 = arith.constant 0 : index
    %21 = vector.load %arg6[%c7_13, %c0_14] : memref<8x128xf32, #tpu.memory_space<vmem>>, vector<1x128xf32>
    %22 = vector.shape_cast %21 : vector<1x128xf32> to vector<1x128xf32>
    %23 = vector.broadcast %22 : vector<1x128xf32> to vector<8x128xf32>
    %24 = arith.select %20, %23, %18 : vector<8x128xi1>, vector<8x128xf32>
    %c8_i32 = arith.constant 8 : i32
    %25 = arith.muli %arg1, %c8_i32 : i32
    %c1_i32_15 = arith.constant 1 : i32
    %26 = arith.subi %c1_i32_15, %25 : i32
    %c8_i32_16 = arith.constant 8 : i32
    %27 = arith.muli %arg1, %c8_i32_16 : i32
    %c15_i32 = arith.constant 15 : i32
    %28 = arith.subi %c15_i32, %27 : i32
    %29 = vector.broadcast %26 : i32 to vector<8x128xi32>
    %30 = arith.cmpi sge, %7, %29 : vector<8x128xi32>
    %31 = vector.broadcast %28 : i32 to vector<8x128xi32>
    %32 = arith.cmpi sle, %7, %31 : vector<8x128xi32>
    %33 = arith.andi %30, %32 : vector<8x128xi1>
    %cst = arith.constant 0.000000e+00 : f32
    %34 = vector.broadcast %cst : f32 to vector<8x128xf32>
    %35 = arith.select %33, %24, %34 : vector<8x128xi1>, vector<8x128xf32>
    %36 = arith.subf %4, %17 : vector<4x8x128xf32>
    %37 = math.absf %36 : vector<4x8x128xf32>
    %cst_17 = arith.constant dense<0.000000e+00> : vector<8x128xf32>
    %38 = vector.multi_reduction <add>, %37, %cst_17 [0] : vector<4x8x128xf32> to vector<8x128xf32>
    %c127_i32 = arith.constant 127 : i32
    %39 = tpu.dynamic_rotate %4 by %c127_i32 dim 2 : vector<4x8x128xf32>, i32 -> vector<4x8x128xf32>
    %40 = arith.subf %4, %39 : vector<4x8x128xf32>
    %41 = math.absf %40 : vector<4x8x128xf32>
    %cst_18 = arith.constant dense<0.000000e+00> : vector<8x128xf32>
    %42 = vector.multi_reduction <add>, %41, %cst_18 [0] : vector<4x8x128xf32> to vector<8x128xf32>
    %c127_i32_19 = arith.constant 127 : i32
    %43 = vector.broadcast %c127_i32_19 : i32 to vector<8x128xi32>
    %44 = arith.cmpi slt, %8, %43 : vector<8x128xi32>
    %cst_20 = arith.constant 0.000000e+00 : f32
    %45 = vector.broadcast %cst_20 : f32 to vector<8x128xf32>
    %46 = arith.select %44, %6, %45 : vector<8x128xi1>, vector<8x128xf32>
    %47 = arith.mulf %38, %35 : vector<8x128xf32>
    %cst_21 = arith.constant dense<0.000000e+00> : vector<128xf32>
    %48 = vector.multi_reduction <add>, %47, %cst_21 [0] : vector<8x128xf32> to vector<128xf32>
    %49 = vector.shape_cast %48 : vector<128xf32> to vector<1x128xf32>
    %50 = arith.mulf %42, %46 : vector<8x128xf32>
    %cst_22 = arith.constant dense<0.000000e+00> : vector<128xf32>
    %51 = vector.multi_reduction <add>, %50, %cst_22 [0] : vector<8x128xf32> to vector<128xf32>
    %52 = vector.shape_cast %51 : vector<128xf32> to vector<1x128xf32>
    %cst_23 = arith.constant dense<0.000000e+00> : vector<128xf32>
    %53 = vector.multi_reduction <add>, %35, %cst_23 [0] : vector<8x128xf32> to vector<128xf32>
    %54 = vector.shape_cast %53 : vector<128xf32> to vector<1x128xf32>
    %cst_24 = arith.constant dense<0.000000e+00> : vector<128xf32>
    %55 = vector.multi_reduction <add>, %46, %cst_24 [0] : vector<8x128xf32> to vector<128xf32>
    %56 = vector.shape_cast %55 : vector<128xf32> to vector<1x128xf32>
    %57 = tpu.iota {dimensions = array<i32: 0>} : vector<8x128xi32>
    %c0_i32_25 = arith.constant 0 : i32
    %58 = vector.broadcast %c0_i32_25 : i32 to vector<8x128xi32>
    %59 = arith.cmpi eq, %57, %58 : vector<8x128xi32>
    %cst_26 = arith.constant 0.000000e+00 : f32
    %60 = vector.shape_cast %49 : vector<1x128xf32> to vector<1x128xf32>
    %61 = vector.broadcast %60 : vector<1x128xf32> to vector<8x128xf32>
    %62 = vector.broadcast %cst_26 : f32 to vector<8x128xf32>
    %63 = arith.select %59, %61, %62 : vector<8x128xi1>, vector<8x128xf32>
    %c1_i32_27 = arith.constant 1 : i32
    %64 = vector.broadcast %c1_i32_27 : i32 to vector<8x128xi32>
    %65 = arith.cmpi eq, %57, %64 : vector<8x128xi32>
    %cst_28 = arith.constant 0.000000e+00 : f32
    %66 = vector.shape_cast %52 : vector<1x128xf32> to vector<1x128xf32>
    %67 = vector.broadcast %66 : vector<1x128xf32> to vector<8x128xf32>
    %68 = vector.broadcast %cst_28 : f32 to vector<8x128xf32>
    %69 = arith.select %65, %67, %68 : vector<8x128xi1>, vector<8x128xf32>
    %70 = arith.addf %63, %69 : vector<8x128xf32>
    %c2_i32 = arith.constant 2 : i32
    %71 = vector.broadcast %c2_i32 : i32 to vector<8x128xi32>
    %72 = arith.cmpi eq, %57, %71 : vector<8x128xi32>
    %cst_29 = arith.constant 0.000000e+00 : f32
    %73 = vector.shape_cast %54 : vector<1x128xf32> to vector<1x128xf32>
    %74 = vector.broadcast %73 : vector<1x128xf32> to vector<8x128xf32>
    %75 = vector.broadcast %cst_29 : f32 to vector<8x128xf32>
    %76 = arith.select %72, %74, %75 : vector<8x128xi1>, vector<8x128xf32>
    %77 = arith.addf %70, %76 : vector<8x128xf32>
    %c3_i32 = arith.constant 3 : i32
    %78 = vector.broadcast %c3_i32 : i32 to vector<8x128xi32>
    %79 = arith.cmpi eq, %57, %78 : vector<8x128xi32>
    %cst_30 = arith.constant 0.000000e+00 : f32
    %80 = vector.shape_cast %56 : vector<1x128xf32> to vector<1x128xf32>
    %81 = vector.broadcast %80 : vector<1x128xf32> to vector<8x128xf32>
    %82 = vector.broadcast %cst_30 : f32 to vector<8x128xf32>
    %83 = arith.select %79, %81, %82 : vector<8x128xi1>, vector<8x128xf32>
    %84 = arith.addf %77, %83 : vector<8x128xf32>
    %c0_31 = arith.constant 0 : index
    %c0_32 = arith.constant 0 : index
    %c0_33 = arith.constant 0 : index
    %85 = vector.load %arg4[%c0_31, %c0_32, %c0_33] : memref<1x8x128xf32, #tpu.memory_space<vmem>>, vector<1x8x128xf32>
    %86 = vector.shape_cast %85 : vector<1x8x128xf32> to vector<8x128xf32>
    %87 = arith.addf %86, %84 : vector<8x128xf32>
    %c0_34 = arith.constant 0 : index
    %c0_35 = arith.constant 0 : index
    %c0_36 = arith.constant 0 : index
    %88 = vector.load %arg4[%c0_34, %c0_35, %c0_36] : memref<1x8x128xf32, #tpu.memory_space<vmem>>, vector<1x8x128xf32>
    %89 = vector.shape_cast %88 : vector<1x8x128xf32> to vector<8x128xf32>
    %90 = vector.shape_cast %87 : vector<8x128xf32> to vector<1x8x128xf32>
    tpu.vector_store %arg4[%c0_34, %c0_35, %c0_36], %90 {strides = array<i32>} : memref<1x8x128xf32, #tpu.memory_space<vmem>>, vector<1x8x128xf32>,
    %c0_37 = arith.constant 0 : index
    %c0_38 = arith.constant 0 : index
    %c0_39 = arith.constant 0 : index
    %91 = vector.load %arg5[%c0_37, %c0_38, %c0_39] : memref<4x8x128xf32, #tpu.memory_space<vmem>>, vector<4x8x128xf32>
    tpu.vector_store %arg5[%c0_37, %c0_38, %c0_39], %4 {strides = array<i32>} : memref<4x8x128xf32, #tpu.memory_space<vmem>>, vector<4x8x128xf32>,
    %c0_40 = arith.constant 0 : index
    %c0_41 = arith.constant 0 : index
    %92 = vector.load %arg6[%c0_40, %c0_41] : memref<8x128xf32, #tpu.memory_space<vmem>>, vector<8x128xf32>
    tpu.vector_store %arg6[%c0_40, %c0_41], %6 {strides = array<i32>} : memref<8x128xf32, #tpu.memory_space<vmem>>, vector<8x128xf32>,
    return
  }
  func.func @transform_0(%arg0: i32, %arg1: i32) -> (i32, i32, i32, i32) {
    %c0_i32 = arith.constant 0 : i32
    %c0_i32_0 = arith.constant 0 : i32
    %c0_i32_1 = arith.constant 0 : i32
    return %arg0, %c0_i32, %arg1, %c0_i32_0 : i32, i32, i32, i32
  }
  func.func @transform_1(%arg0: i32, %arg1: i32) -> (i32, i32, i32, i32) {
    %c0_i32 = arith.constant 0 : i32
    %c0_i32_0 = arith.constant 0 : i32
    %c0_i32_1 = arith.constant 0 : i32
    return %arg0, %c0_i32, %arg1, %c0_i32_0 : i32, i32, i32, i32
  }
  func.func @transform_2(%arg0: i32, %arg1: i32) -> (i32, i32, i32) {
    %c0_i32 = arith.constant 0 : i32
    %c0_i32_0 = arith.constant 0 : i32
    %c0_i32_1 = arith.constant 0 : i32
    return %arg0, %c0_i32, %c0_i32_0 : i32, i32, i32
  }
}

</mosaic_0001>

<llo_original>
// kernel: tpu_custom_call.1
$region0: #{tpu_custom_call.1}
  #allocation0 [shape = 'u32[]', space=smem, size = 0x4, offset = 0x4, fixed_abs, tag = 'smem constant byte address 0x4 - core index']
  #allocation1 [shape = 'u32[144,128]{1,0:T(1,128)}', space=vmem, size = 0x12000, scoped, tag = 'internal scratch']
  #allocation2 [shape = 'f32[4,8,128]{2,1,0:T(8,128)}', space=vmem, size = 0x4000, scoped, tag = 'scratch operand']
  #allocation3 [shape = 'f32[8,128]{1,0:T(8,128)}', space=vmem, size = 0x1000, scoped, tag = 'scratch operand']
  %s0 = inlined_call_operand.hbm [shape: f32[2,4,16,128], index: 0, kind: input, shape index: {}]
  %s1 = inlined_call_operand.hbm [shape: f32[2,1,16,128], index: 1, kind: input, shape index: {}]
  %s2 = inlined_call_operand.hbm [shape: f32[2,8,128], index: 2, kind: output, shape index: {}]
  %s3 = sld [smem:[#allocation0]]
  $region53: #{tpu_custom_call.1} parent=0
    _
  %s5 = ssub.s32 1, %s3
  %s6 = scalar_select 0, %s5, %s3
  $region1: #{tpu_custom_call.1} parent=0
    #allocation4 [shape = 'u8[32768]{0}', space=vmem, size = 0x8000, scoped, tag = 'input window, operand 0']
    #allocation5 [shape = 's32[2]{0}', space=sflag, size = 0x8, scoped, tag = 'scoped memory for tpu_custom_call.1']
    #allocation6 [shape = 's32[2]{0}', space=sflag, size = 0x8, scoped, tag = 'scoped memory for tpu_custom_call.1']
    #allocation7 [shape = 'u8[8192]{0}', space=vmem, size = 0x2000, scoped, tag = 'input window, operand 1']
    #allocation8 [shape = 's32[2]{0}', space=sflag, size = 0x8, scoped, tag = 'scoped memory for tpu_custom_call.1']
    #allocation9 [shape = 'u8[8192]{0}', space=vmem, size = 0x2000, scoped, tag = 'output window, operand 0']
    %7 = vsyncpa [#allocation5], 0
    %s8 = scalar_lea.sflag [#allocation5], 1
    %9 = vsyncpa %s8, 0
    %10 = vsyncpa [#allocation8], 0
    %s11 = scalar_lea.sflag [#allocation8], 1
    %12 = vsyncpa %s11, 0
    %13 = vsyncpa [#allocation6], 0
    %s14 = scalar_lea.sflag [#allocation6], 1
    %15 = vsyncpa %s14, 0
    loop: start=0, step=1, limit=6
    $region2: #{tpu_custom_call.1} parent=1 // loop_pre_header
      _
    $region3: #{tpu_custom_call.1} parent=1 // loop_header
      %s17 = sphi 0, %s21
      %p18 = scmp.ge.s32.totalorder %s17, 6
      %s24 = sphi 0, %s36
      %s25 = sphi 0, %s32
      %s26 = sphi 0, %s24
      %s27 = sphi 0, %s25
      %s28 = sphi 0, %s26
      %s29 = sphi 0, %s27
      %s41 = sphi 0, %s43
      %s44 = sphi 0, %s41
      %s45 = sphi 0, %s44
      %s61 = sphi 0, %s45
      %s69 = sphi 0, %s71
      %s72 = sphi 0, %s69
      %s73 = sphi 0, %s72
      %s89 = sphi 0, %s73
      %s95 = sphi 0, %s97
      %s98 = sphi 0, %s95
      %s99 = sphi 0, %s98
      %s115 = sphi 0, %s99
    $region4: #{tpu_custom_call.1} parent=1 // loop_header_branch
      %20 = sbr.rel (%p18) target = $region8
    $region5: #{tpu_custom_call.1} parent=1 // loop_body
      %s22 = ssub.s32 %s17, 1
      %s23 = ssub.s32 %s17, 2
      %s30 = sadd.s32 1, %s25
      %p31 = scmp.ge.s32.totalorder %s30, 2
      %s32 = scalar_select %p31, 0, %s30
      %s33 = sadd.s32 1, %s24
      %s34 = scalar_select %p31, %s33, %s24
      %p35 = scmp.ge.s32.totalorder %s34, 2
      %s36 = scalar_select %p35, 0, %s34
      %s37 = ssub.s32 %s24, %s36
      %s38 = ssub.s32 %s25, %s32
      %s39 = sor.u32 %s37, %s38
      %p40 = scmp.eq.s32.totalorder %s39, 0
      %s42 = sadd.s32 %s41, 1
      %s43 = scalar_select %p40, %s41, %s42
      %p46 = pneg %p40
      %p47 = scmp.eq.s32.totalorder %s17, 3
      %p48 = por %p46, %p47
      %p49 = scmp.ne.s32.totalorder %s41, %s44
      %p50 = scmp.eq.s32.totalorder %s17, 0
      %p51 = por %p49, %p50
      %p52 = scmp.ne.s32.totalorder %s41, %s44
      %p53 = scmp.eq.s32.totalorder %s22, 3
      %p54 = por %p52, %p53
      %p55 = scmp.ne.s32.totalorder %s44, %s45
      %p56 = scmp.eq.s32.totalorder %s22, 0
      %p57 = por %p55, %p56
      %p58 = scmp.ne.s32.totalorder %s44, %s45
      %p59 = scmp.eq.s32.totalorder %s23, 3
      %p60 = por %p58, %p59
      %p62 = scmp.ne.s32.totalorder %s45, %s61
      %p63 = scmp.eq.s32.totalorder %s23, 0
      %p64 = por %p62, %p63
      %s65 = ssub.s32 %s24, %s36
      %s66 = ssub.s32 %s25, %s32
      %s67 = sor.u32 %s65, %s66
      %p68 = scmp.eq.s32.totalorder %s67, 0
      %s70 = sadd.s32 %s69, 1
      %s71 = scalar_select %p68, %s69, %s70
      %p74 = pneg %p68
      %p75 = scmp.eq.s32.totalorder %s17, 3
      %p76 = por %p74, %p75
      %p77 = scmp.ne.s32.totalorder %s69, %s72
      %p78 = scmp.eq.s32.totalorder %s17, 0
      %p79 = por %p77, %p78
      %p80 = scmp.ne.s32.totalorder %s69, %s72
      %p81 = scmp.eq.s32.totalorder %s22, 3
      %p82 = por %p80, %p81
      %p83 = scmp.ne.s32.totalorder %s72, %s73
      %p84 = scmp.eq.s32.totalorder %s22, 0
      %p85 = por %p83, %p84
      %p86 = scmp.ne.s32.totalorder %s72, %s73
      %p87 = scmp.eq.s32.totalorder %s23, 3
      %p88 = por %p86, %p87
      %p90 = scmp.ne.s32.totalorder %s73, %s89
      %p91 = scmp.eq.s32.totalorder %s23, 0
      %p92 = por %p90, %p91
      %s93 = ssub.s32 %s24, %s36
      %p94 = scmp.eq.s32.totalorder %s93, 0
      %s96 = sadd.s32 %s95, 1
      %s97 = scalar_select %p94, %s95, %s96
      %p100 = pneg %p94
      %p101 = scmp.eq.s32.totalorder %s17, 3
      %p102 = por %p100, %p101
      %p103 = scmp.ne.s32.totalorder %s95, %s98
      %p104 = scmp.eq.s32.totalorder %s17, 0
      %p105 = por %p103, %p104
      %p106 = scmp.ne.s32.totalorder %s95, %s98
      %p107 = scmp.eq.s32.totalorder %s22, 3
      %p108 = por %p106, %p107
      %p109 = scmp.ne.s32.totalorder %s98, %s99
      %p110 = scmp.eq.s32.totalorder %s22, 0
      %p111 = por %p109, %p110
      %p112 = scmp.ne.s32.totalorder %s98, %s99
      %p113 = scmp.eq.s32.totalorder %s23, 3
      %p114 = por %p112, %p113
      %p116 = scmp.ne.s32.totalorder %s99, %s115
      %p117 = scmp.eq.s32.totalorder %s23, 0
      %p118 = por %p116, %p117
      %p119 = scmp.le.s32.totalorder 1, %s17
      %p120 = scmp.lt.s32.totalorder %s17, 5
      %p121 = pnand %p119, %p120
      %p122 = pneg %p121
      // Predicated region
      $region9: #{tpu_custom_call.1} parent=5 // pred_check
        _
      $region10: #{tpu_custom_call.1} parent=5 // pred_check_branch
        %124 = sbr.rel (%p121) target = $region12
      $region11: #{tpu_custom_call.1} parent=5 // pred_region
        %s125 = ssub.s32 %s17, 1
      $region12: #{tpu_custom_call.1} parent=5 // pred_fallthru
        _
      %p126 = scmp.lt.s32.totalorder %s17, 4
      // Predicated region
      $region13: #{tpu_custom_call.1} parent=5 // pred_check
        %p127 = pneg %p126
      $region14: #{tpu_custom_call.1} parent=5 // pred_check_branch
        %129 = sbr.rel (%p127) target = $region16
      $region15: #{tpu_custom_call.1} parent=5 // pred_region
        // Predicated region
        $region17: #{tpu_custom_call.1} parent=15 // pred_check
          %p130 = pneg %p51
        $region18: #{tpu_custom_call.1} parent=15 // pred_check_branch
          %132 = sbr.rel (%p130) target = $region20
        $region19: #{tpu_custom_call.1} parent=15 // pred_region
          %s133 = sand.u32 %s41, 1
          %s134 = scalar_lea.sflag [#allocation5], %s133
          %s135 = sand.u32 %s41, 1
          %s136 = smul.addr %s135, 32
          %s137 = scalar_lea.vmem [#allocation4], %s136
          %s139 = ssub.s32 512, 512
          %140 = vsyncadd %s134, %s139
          %s141 = smul.addr %s24, 8
          %s142 = sadd.s32 %s25, %s141
          %s143 = smul.addr %s142, 128
          %s144 = scalar_lea.hbm %s0, %s143
          %s145 = sshll.u32 %s137, 4
          %s146 = int_to_ptr.vmem [resolvable:$true] %s145
          %151 = dma.hbm_to_vmem [thread:$0]  %s144, 512, %s146, %s134, 256, 128, 8
        $region20: #{tpu_custom_call.1} parent=15 // pred_fallthru
          _
        // Predicated region
        $region21: #{tpu_custom_call.1} parent=15 // pred_check
          %p152 = pneg %p79
        $region22: #{tpu_custom_call.1} parent=15 // pred_check_branch
          %154 = sbr.rel (%p152) target = $region24
        $region23: #{tpu_custom_call.1} parent=15 // pred_region
          %s155 = sand.u32 %s69, 1
          %s156 = scalar_lea.sflag [#allocation8], %s155
          %s157 = sand.u32 %s69, 1
          %s158 = smul.addr %s157, 8
          %s159 = scalar_lea.vmem [#allocation7], %s158
          %s161 = ssub.s32 128, 128
          %162 = vsyncadd %s156, %s161
          %s163 = smul.addr %s24, 2
          %s164 = sadd.s32 %s25, %s163
          %s165 = smul.addr %s164, 128
          %s166 = scalar_lea.hbm %s1, %s165
          %s168 = sshll.u32 %s159, 4
          %s169 = int_to_ptr.vmem [resolvable:$true] %s168
          %171 = dma.hbm_to_vmem [thread:$0]  %s166, 128, %s169, %s156
        $region24: #{tpu_custom_call.1} parent=15 // pred_fallthru
          _
      $region16: #{tpu_custom_call.1} parent=5 // pred_fallthru
        _
      %p172 = scmp.le.s32.totalorder 1, %s17
      %p173 = scmp.lt.s32.totalorder %s17, 5
      %p174 = pnand %p172, %p173
      %p175 = pneg %p174
      // Predicated region
      $region25: #{tpu_custom_call.1} parent=5 // pred_check
        _
      $region26: #{tpu_custom_call.1} parent=5 // pred_check_branch
        %177 = sbr.rel (%p174) target = $region28
      $region27: #{tpu_custom_call.1} parent=5 // pred_region
        %s178 = ssub.s32 %s17, 1
        %s179 = sand.u32 %s44, 1
        %s180 = scalar_lea.sflag [#allocation5], %s179
        %s181 = sand.u32 %s44, 1
        %s182 = smul.addr %s181, 32
        %s183 = scalar_lea.vmem [#allocation4], %s182
        // Predicated region
        $region29: #{tpu_custom_call.1} parent=27 // pred_check
          %p184 = pneg %p57
        $region30: #{tpu_custom_call.1} parent=27 // pred_check_branch
          %186 = sbr.rel (%p184) target = $region32
        $region31: #{tpu_custom_call.1} parent=27 // pred_region
          %187 = dma.done %s180, 512
        $region32: #{tpu_custom_call.1} parent=27 // pred_fallthru
          _
        %s188 = sand.u32 %s72, 1
        %s189 = scalar_lea.sflag [#allocation8], %s188
        %s190 = sand.u32 %s72, 1
        %s191 = smul.addr %s190, 8
        %s192 = scalar_lea.vmem [#allocation7], %s191
        // Predicated region
        $region33: #{tpu_custom_call.1} parent=27 // pred_check
          %p193 = pneg %p85
        $region34: #{tpu_custom_call.1} parent=27 // pred_check_branch
          %195 = sbr.rel (%p193) target = $region36
        $region35: #{tpu_custom_call.1} parent=27 // pred_region
          %196 = dma.done %s189, 128
        $region36: #{tpu_custom_call.1} parent=27 // pred_fallthru
          _
        %s197 = sand.u32 %s44, 1
        %s198 = scalar_lea.sflag [#allocation5], %s197
        %s199 = sand.u32 %s44, 1
        %s200 = smul.addr %s199, 32
        %s201 = scalar_lea.vmem [#allocation4], %s200
        %p202 = pneg %p57
        %p203 = pneg %p54
        %s204 = sand.u32 %s72, 1
        %s205 = scalar_lea.sflag [#allocation8], %s204
        %s206 = sand.u32 %s72, 1
        %s207 = smul.addr %s206, 8
        %s208 = scalar_lea.vmem [#allocation7], %s207
        %p209 = pneg %p85
        %p210 = pneg %p82
        %p211 = pneg %p111
        %p212 = pneg %p108
        %s213 = sand.u32 %s98, 1
        %s214 = scalar_lea.sflag [#allocation6], %s213
        %s215 = sand.u32 %s98, 1
        %s216 = smul.addr %s215, 8
        %s217 = scalar_lea.vmem [#allocation9], %s216
        %p218 = scmp.eq.s32.totalorder %s27, 0
        // Predicated region
        $region37: #{tpu_custom_call.1} parent=27 // pred_check
          %p219 = pneg %p218
        $region38: #{tpu_custom_call.1} parent=27 // pred_check_branch
          %221 = sbr.rel (%p219) target = $region40
        $region39: #{tpu_custom_call.1} parent=27 // pred_region
          %222 = vst [vmem:[%s217] sm:$0xff] 0.0
          %223 = vst [vmem:[#allocation2] sm:$0xff] 0.0
          %224 = vst [vmem:[#allocation2 + $0x8] sm:$0xff] 0.0
          %225 = vst [vmem:[#allocation2 + $0x10] sm:$0xff] 0.0
          %226 = vst [vmem:[#allocation2 + $0x18] sm:$0xff] 0.0
          %227 = vst [vmem:[#allocation3] sm:$0xff] 0.0
        $region40: #{tpu_custom_call.1} parent=27 // pred_fallthru
          _
        %v228 = vld [vmem:[%s183] sm:$0xff]
        %v229 = vld [vmem:[%s183 + $0x8] sm:$0xff]
        %v230 = vld [vmem:[%s183 + $0x10] sm:$0xff]
        %v231 = vld [vmem:[%s183 + $0x18] sm:$0xff]
        %v232 = vld [vmem:[%s192] sm:$0xff]
        %v233 = vlaneseq
        %v234 = vshrl.u32 %v233, 7
        %v235 = vlaneseq
        %v236 = vand.u32 %v235, 127
        %v237 = vrot.slane %v228, 7
        %v238 = vrot.slane %v229, 7
        %v239 = vrot.slane %v230, 7
        %v240 = vrot.slane %v231, 7
        %vm241 = vcmp.eq.s32.totalorder %v234, 0
        %v242 = vld [vmem:[#allocation2 + $0x7] sm:$0x1]
        %v243 = vld [vmem:[#allocation2 + $0xf] sm:$0x1]
        %v244 = vld [vmem:[#allocation2 + $0x17] sm:$0x1]
        %v245 = vld [vmem:[#allocation2 + $0x1f] sm:$0x1]
        %v246 = vsel %vm241, 1, 0
        %vm247 = vcmp.eq.s32.totalorder %v246, 1
        %v248 = vlaneseq
        %v249 = vshrl.u32 %v248, 7
        %v250 = vsub.s32 0, %v249
        %v251 = vrot.slane %v242, %v250
        %v252 = vlaneseq
        %v253 = vshrl.u32 %v252, 7
        %v254 = vsub.s32 0, %v253
        %v255 = vrot.slane %v243, %v254
        %v256 = vlaneseq
        %v257 = vshrl.u32 %v256, 7
        %v258 = vsub.s32 0, %v257
        %v259 = vrot.slane %v244, %v258
        %v260 = vlaneseq
        %v261 = vshrl.u32 %v260, 7
        %v262 = vsub.s32 0, %v261
        %v263 = vrot.slane %v245, %v262
        %v264 = vsel %vm247, %v251, %v237
        %v265 = vsel %vm247, %v255, %v238
        %v266 = vsel %vm247, %v259, %v239
        %v267 = vsel %vm247, %v263, %v240
        %v268 = vrot.slane %v232, 7
        %v269 = vld [vmem:[#allocation3 + $0x7] sm:$0x1]
        %v270 = vlaneseq
        %v271 = vshrl.u32 %v270, 7
        %v272 = vsub.s32 0, %v271
        %v273 = vrot.slane %v269, %v272
        %v274 = vsel %vm241, %v273, %v268
        %s275 = smul.u32 %s27, 8
        %s276 = ssub.s32 1, %s275
        %s277 = ssub.s32 15, %s275
        %v278 = vstv %s276
        %vm279 = vcmp.ge.s32.totalorder %v234, %v278
        %v280 = vstv %s277
        %vm281 = vcmp.le.s32.totalorder %v234, %v280
        %vm282 = vmand %vm279, %vm281
        %v283 = vsel %vm282, %v274, 0.0
        %v284 = vsub.f32 %v228, %v264
        %v285 = vsub.f32 %v229, %v265
        %v286 = vsub.f32 %v230, %v266
        %v287 = vsub.f32 %v231, %v267
        %v288 = vand.u32 2147483647, %v284
        %v289 = vand.u32 2147483647, %v285
        %v290 = vand.u32 2147483647, %v286
        %v291 = vand.u32 2147483647, %v287
        %v292 = vadd.f32 %v288, %v289
        %v293 = vadd.f32 %v292, %v290
        %v294 = vadd.f32 %v293, %v291
        %295 = vrot.lane.b32.xlu0 %v228, 127
        %v296 = vpop.permute.xlu0 %295
        %297 = vrot.lane.b32.xlu0 %v229, 127
        %v298 = vpop.permute.xlu0 %297
        %299 = vrot.lane.b32.xlu0 %v230, 127
        %v300 = vpop.permute.xlu0 %299
        %301 = vrot.lane.b32.xlu0 %v231, 127
        %v302 = vpop.permute.xlu0 %301
        %v303 = vsub.f32 %v228, %v296
        %v304 = vsub.f32 %v229, %v298
        %v305 = vsub.f32 %v230, %v300
        %v306 = vsub.f32 %v231, %v302
        %v307 = vand.u32 2147483647, %v303
        %v308 = vand.u32 2147483647, %v304
        %v309 = vand.u32 2147483647, %v305
        %v310 = vand.u32 2147483647, %v306
        %v311 = vadd.f32 %v307, %v308
        %v312 = vadd.f32 %v311, %v309
        %v313 = vadd.f32 %v312, %v310
        %vm314 = vcmp.lt.s32.totalorder %v236, 127
        %v315 = vsel %vm314, %v232, 0.0
        %v316 = vmul.f32 %v294, %v283
        %v317 = vrot.slane %v316, 4
        %v318 = vadd.f32 %v316, %v317
        %v319 = vrot.slane %v318, 2
        %v320 = vadd.f32 %v318, %v319
        %v321 = vrot.slane %v320, 1
        %v322 = vadd.f32 %v320, %v321
        %v323 = vmul.f32 %v313, %v315
        %v324 = vrot.slane %v323, 4
        %v325 = vadd.f32 %v323, %v324
        %v326 = vrot.slane %v325, 2
        %v327 = vadd.f32 %v325, %v326
        %v328 = vrot.slane %v327, 1
        %v329 = vadd.f32 %v327, %v328
        %v330 = vrot.slane %v283, 4
        %v331 = vadd.f32 %v283, %v330
        %v332 = vrot.slane %v331, 2
        %v333 = vadd.f32 %v331, %v332
        %v334 = vrot.slane %v333, 1
        %v335 = vadd.f32 %v333, %v334
        %v336 = vrot.slane %v315, 4
        %v337 = vadd.f32 %v315, %v336
        %v338 = vrot.slane %v337, 2
        %v339 = vadd.f32 %v337, %v338
        %v340 = vrot.slane %v339, 1
        %v341 = vadd.f32 %v339, %v340
        %v342 = vsel %vm241, %v322, 0.0
        %vm343 = vcmp.eq.s32.totalorder %v234, 1
        %v344 = vsel %vm343, %v329, 0.0
        %v345 = vadd.f32 %v342, %v344
        %vm346 = vcmp.eq.s32.totalorder %v234, 2
        %v347 = vsel %vm346, %v335, 0.0
        %v348 = vadd.f32 %v345, %v347
        %vm349 = vcmp.eq.s32.totalorder %v234, 3
        %v350 = vsel %vm349, %v341, 0.0
        %v351 = vadd.f32 %v348, %v350
        %v352 = vld [vmem:[%s217] sm:$0xff]
        %v353 = vadd.f32 %v352, %v351
        %354 = vst [vmem:[%s217] sm:$0xff] %v353
        %355 = vst [vmem:[#allocation2] sm:$0xff] %v228
        %356 = vst [vmem:[#allocation2 + $0x8] sm:$0xff] %v229
        %357 = vst [vmem:[#allocation2 + $0x10] sm:$0xff] %v230
        %358 = vst [vmem:[#allocation2 + $0x18] sm:$0xff] %v231
        %359 = vst [vmem:[#allocation3] sm:$0xff] %v232
        %s360 = sand.u32 %s98, 1
        %s361 = scalar_lea.sflag [#allocation6], %s360
        %s362 = sand.u32 %s98, 1
        %s363 = smul.addr %s362, 8
        %s364 = scalar_lea.vmem [#allocation9], %s363
        // Predicated region
        $region41: #{tpu_custom_call.1} parent=27 // pred_check
          %p365 = pneg %p108
        $region42: #{tpu_custom_call.1} parent=27 // pred_check_branch
          %367 = sbr.rel (%p365) target = $region44
        $region43: #{tpu_custom_call.1} parent=27 // pred_region
          %s369 = ssub.s32 128, 128
          %370 = vsyncadd %s361, %s369
          %s371 = smul.addr %s26, 128
          %s372 = scalar_lea.hbm %s2, %s371
          %s374 = sshll.u32 %s364, 4
          %s375 = int_to_ptr.vmem [resolvable:$true] %s374
          %377 = dma.vmem_to_hbm [thread:$0]  %s375, 128, %s372, %s361
        $region44: #{tpu_custom_call.1} parent=27 // pred_fallthru
          _
      $region28: #{tpu_custom_call.1} parent=5 // pred_fallthru
        _
      %p378 = scmp.le.s32.totalorder 2, %s17
      // Predicated region
      $region45: #{tpu_custom_call.1} parent=5 // pred_check
        %p379 = pneg %p378
      $region46: #{tpu_custom_call.1} parent=5 // pred_check_branch
        %381 = sbr.rel (%p379) target = $region48
      $region47: #{tpu_custom_call.1} parent=5 // pred_region
        %s382 = ssub.s32 %s17, 2
        // Predicated region
        $region49: #{tpu_custom_call.1} parent=47 // pred_check
          %p383 = pneg %p114
        $region50: #{tpu_custom_call.1} parent=47 // pred_check_branch
          %385 = sbr.rel (%p383) target = $region52
        $region51: #{tpu_custom_call.1} parent=47 // pred_region
          %s386 = sand.u32 %s99, 1
          %s387 = scalar_lea.sflag [#allocation6], %s386
          %s388 = sand.u32 %s99, 1
          %s389 = smul.addr %s388, 8
          %s390 = scalar_lea.vmem [#allocation9], %s389
          %391 = dma.done %s387, 128
        $region52: #{tpu_custom_call.1} parent=47 // pred_fallthru
          _
      $region48: #{tpu_custom_call.1} parent=5 // pred_fallthru
        _
    $region6: #{tpu_custom_call.1} parent=1 // loop_footer
      %s21 = sadd.s32 1, %s17
    $region7: #{tpu_custom_call.1} parent=1 // loop_footer_branch
      %16 = sbr.rel target = $region3
    $region8: #{tpu_custom_call.1} parent=1 // loop_exit
      _
    %392 = vsyncpa [#allocation5], 1
    %s393 = scalar_lea.sflag [#allocation5], 1
    %394 = vsyncpa %s393, 1
    %395 = vsyncpa [#allocation8], 1
    %s396 = scalar_lea.sflag [#allocation8], 1
    %397 = vsyncpa %s396, 1
    %398 = vsyncpa [#allocation6], 1
    %s399 = scalar_lea.sflag [#allocation6], 1
    %400 = vsyncpa %s399, 1

</llo_original>
